<compile_context>
chip_gen: v7x
topology: tpu7x:2x2x1
jax: 0.10.0
libtpu: 0.0.40
codegen_flags: <defaults>
</compile_context>

<pallas_src>
import functools

import jax
import jax.numpy as jnp
from jax.experimental import pallas as pl
from jax.experimental.pallas import tpu as pltpu


def _rnn_seq_kernel(
    x_ref,      # (T, C)  concat(category, input) rows
    h0_ref,     # (1, H)  initial hidden
    w_fc_ref,   # (C, H)  fc weight (pre-transposed)
    w_ih_ref,   # (H, 3H) fused GRU input-gate weights, columns [r|z|n]
    w_hh_ref,   # (H, 3H) fused GRU hidden-gate weights, columns [r|z|n]
    w_fc2_ref,  # (H, O)  fc2 weight (pre-transposed)
    b_ref,      # (4, Gb) packed biases: [b_fc | b_ih+b_hh[rz] | b_hh[n] | b_fc2]
    logp_ref,   # (T, O)  output log-probs
    hT_ref,     # (1, H)  output final hidden (aliased with h0)
    h_all,      # VMEM scratch (T, H): per-step hidden states for the epilogue
):
    T = x_ref.shape[0]
    H = hT_ref.shape[-1]
    O = logp_ref.shape[-1]
    G = 3 * H

    b = b_ref[...]
    b_fc = b[0:1, :H]      # fc bias
    b_gi = b[1:2, :G]      # b_ih with b_hh's r,z portions folded in
    b_hn = b[2:3, :H]      # b_hh n-gate portion (must stay inside r*(...))
    b_fc2 = b[3:4, :O]     # fc2 bias

    # ---- batched prologue (h-independent): fc + ReLU, then input-gate dots ----
    x = jnp.maximum(
        jnp.dot(x_ref[...], w_fc_ref[...], preferred_element_type=jnp.float32)
        + b_fc, 0.0)                                                   # (T, H)
    gi = jnp.dot(x, w_ih_ref[...],
                 preferred_element_type=jnp.float32) + b_gi            # (T, 3H)

    w_hh = w_hh_ref[...]
    h = h0_ref[...]                                                    # (1, H)

    # ---- serial recurrence: one (1,H)x(H,3H) dot + gate math per step ----
    # T is a small static Python int; full unroll gives the scheduler constant
    # indices and maximum cross-step overlap of the non-dependent work.
    for t in range(T):
        gi_t = gi[t:t + 1, :]
        gh = jnp.dot(h, w_hh, preferred_element_type=jnp.float32)      # (1, 3H)
        rz = jax.nn.sigmoid(gi_t[:, :2 * H] + gh[:, :2 * H])
        r = rz[:, :H]
        z = rz[:, H:]
        n = jnp.tanh(gi_t[:, 2 * H:] + r * (gh[:, 2 * H:] + b_hn))
        h = (1.0 - z) * n + z * h
        h_all[t:t + 1, :] = h

    hT_ref[...] = h

    # ---- batched epilogue: fc2 + log-softmax over the whole (T, O) slab ----
    logits = jnp.dot(h_all[...], w_fc2_ref[...],
                     preferred_element_type=jnp.float32) + b_fc2
    m = jnp.max(logits, axis=-1, keepdims=True)
    shifted = logits - m
    lse = jnp.log(jnp.sum(jnp.exp(shifted), axis=-1, keepdims=True))
    logp_ref[...] = shifted - lse


class PallasRNN:
    """Parameter container + Pallas forward matching the PyTorch RNN module."""

    def __init__(self, input_size, hidden_size, output_size, n_categories, key):
        self.input_size = input_size
        self.hidden_size = hidden_size
        self.output_size = output_size
        self.n_categories = n_categories

        ks = jax.random.split(key, 8)
        f32 = jnp.float32
        H = hidden_size
        O = output_size
        C = n_categories + input_size

        # nn.Linear(n_categories + input_size, hidden_size)
        fc_w = 0.1 * jax.random.normal(ks[0], (H, C), f32)
        fc_b = 0.1 * jax.random.normal(ks[1], (H,), f32)
        # nn.GRU(hidden_size, hidden_size): weight_ih (3H, H), weight_hh (3H, H)
        w_ih = 0.1 * jax.random.normal(ks[2], (3 * H, H), f32)
        w_hh = 0.1 * jax.random.normal(ks[3], (3 * H, H), f32)
        b_ih = 0.1 * jax.random.normal(ks[4], (3 * H,), f32)
        b_hh = 0.1 * jax.random.normal(ks[5], (3 * H,), f32)
        # nn.Linear(hidden_size, output_size)
        fc2_w = 0.1 * jax.random.normal(ks[6], (O, H), f32)
        fc2_b = 0.1 * jax.random.normal(ks[7], (O,), f32)

        # --- fused / transposed parameters for the kernel (layout glue only) ---
        self.w_fc = jnp.transpose(fc_w)      # (C, H)
        self.w_ih = jnp.transpose(w_ih)      # (H, 3H), columns ordered r|z|n
        self.w_hh = jnp.transpose(w_hh)      # (H, 3H)
        self.w_fc2 = jnp.transpose(fc2_w)    # (H, O)

        # Packed biases (4, Gb):
        #   row 0: b_fc            (prologue)
        #   row 1: b_ih + [b_hh_r, b_hh_z, 0]   (prologue, folded into GI)
        #   row 2: b_hh_n          (in-loop, inside r * (...))
        #   row 3: b_fc2           (epilogue)
        Gb = max(3 * H, O)
        b_gi = b_ih + jnp.concatenate([b_hh[:2 * H], jnp.zeros((H,), f32)])
        bp = jnp.zeros((4, Gb), f32)
        bp = bp.at[0, :H].set(fc_b)
        bp = bp.at[1, :3 * H].set(b_gi)
        bp = bp.at[2, :H].set(b_hh[2 * H:])
        bp = bp.at[3, :O].set(fc2_b)
        self.b_pack = bp                     # (4, Gb)

        # unpacked bias rows, kept only for the pure-JAX reference
        self.b_fc_row = fc_b.reshape(1, H)
        self.b_ih_row = b_ih.reshape(1, 3 * H)
        self.b_hh_row = b_hh.reshape(1, 3 * H)
        self.b_fc2_row = fc2_b.reshape(1, O)

    def init_hidden(self):
        return jnp.zeros((1, self.hidden_size), jnp.float32)

    @functools.partial(jax.jit, static_argnums=0)
    def forward_sequence(self, category, inputs, hidden):
        """Run T GRU steps inside ONE grid-less pallas_call.

        category: (1, n_categories) held fixed over the sequence
        inputs:   (T, input_size)
        hidden:   (1, H) or (1, 1, H)
        returns:  (log-probs (T, output_size), final hidden (1, 1, H))
        """
        T = inputs.shape[0]
        H = self.hidden_size
        O = self.output_size

        # Wrapper-side concat of (category, input) rows: pure layout, free.
        cat_rows = jnp.broadcast_to(
            category.reshape(1, self.n_categories).astype(jnp.float32),
            (T, self.n_categories))
        x_seq = jnp.concatenate([cat_rows, inputs.astype(jnp.float32)], axis=1)
        h0 = hidden.reshape(1, H).astype(jnp.float32)

        # No grid: everything (weights, sequence, outputs) fits VMEM at these
        # sizes, so the whole forward is a single kernel invocation with zero
        # per-step grid overhead.
        logp, h_final = pl.pallas_call(
            _rnn_seq_kernel,
            out_shape=(
                jax.ShapeDtypeStruct((T, O), jnp.float32),
                jax.ShapeDtypeStruct((1, H), jnp.float32),
            ),
            scratch_shapes=[pltpu.VMEM((T, H), jnp.float32)],
            input_output_aliases={1: 1},   # initial hidden -> final hidden
        )(x_seq, h0, self.w_fc, self.w_ih, self.w_hh, self.w_fc2, self.b_pack)

        return logp, h_final.reshape(1, 1, H)

    def __call__(self, category, inp, hidden):
        """Single-step forward matching the PyTorch module API exactly."""
        logp, h_new = self.forward_sequence(
            category, inp.reshape(1, self.input_size), hidden)
        return logp, h_new   # (1, output_size), (1, 1, hidden_size)


def _ref_step(model, category, inp, h):
    """Pure-JAX reference for one step (mirrors the PyTorch forward)."""
    H = model.hidden_size
    h = h.reshape(1, H)
    x = jnp.maximum(
        jnp.concatenate([category, inp], axis=1) @ model.w_fc + model.b_fc_row,
        0.0)
    gi = x @ model.w_ih + model.b_ih_row
    gh = h @ model.w_hh + model.b_hh_row
    r = jax.nn.sigmoid(gi[:, :H] + gh[:, :H])
    z = jax.nn.sigmoid(gi[:, H:2 * H] + gh[:, H:2 * H])
    n = jnp.tanh(gi[:, 2 * H:] + r * gh[:, 2 * H:])
    h_new = (1.0 - z) * n + z * h
    logits = h_new @ model.w_fc2 + model.b_fc2_row
    return jax.nn.log_softmax(logits, axis=1), h_new


if __name__ == "__main__":
    input_size = 16
    hidden_size = 32
    output_size = 16
    n_categories = 8
    seq_len = 8

    key = jax.random.PRNGKey(0)
    k_model, k_cat, k_inp, k_seq = jax.random.split(key, 4)

    model = PallasRNN(input_size, hidden_size, output_size, n_categories, k_model)

    category = jax.nn.one_hot(
        jax.random.randint(k_cat, (1,), 0, n_categories),
        n_categories, dtype=jnp.float32)
    inp = jax.nn.one_hot(
        jax.random.randint(k_inp, (1,), 0, input_size),
        input_size, dtype=jnp.float32)
    hidden = model.init_hidden()

    # --- single-step path (exact PyTorch module semantics) ---
    logp, h_new = model(category, inp, hidden)
    jax.block_until_ready((logp, h_new))

    ref_logp, ref_h = _ref_step(model, category, inp, hidden)
    assert logp.shape == (1, output_size)
    assert h_new.shape == (1, 1, hidden_size)
    assert jnp.allclose(logp, ref_logp, atol=1e-5), "log-softmax mismatch"
    assert jnp.allclose(h_new.reshape(1, hidden_size), ref_h, atol=1e-5), \
        "GRU hidden mismatch"
    assert jnp.allclose(jnp.sum(jnp.exp(logp)), 1.0, atol=1e-5)

    # --- sequence path: whole teacher-forced sequence in one pallas_call ---
    inputs = jax.nn.one_hot(
        jax.random.randint(k_seq, (seq_len,), 0, input_size),
        input_size, dtype=jnp.float32)
    logp_seq, h_final = model.forward_sequence(category, inputs, hidden)
    jax.block_until_ready((logp_seq, h_final))

    h_ref = hidden
    ref_rows = []
    for t in range(seq_len):
        row, h_ref = _ref_step(model, category, inputs[t:t + 1], h_ref)
        ref_rows.append(row)
    ref_seq = jnp.concatenate(ref_rows, axis=0)

    assert logp_seq.shape == (seq_len, output_size)
    assert h_final.shape == (1, 1, hidden_size)
    assert jnp.allclose(logp_seq, ref_seq, atol=1e-4), \
        "sequence log-softmax mismatch"
    assert jnp.allclose(h_final.reshape(1, hidden_size), h_ref, atol=1e-4), \
        "sequence hidden mismatch"

    print("KERNEL_OK")
</pallas_src>

<mosaic_0001>
module attributes {stable_mosaic.version = 11 : i64} {
  func.func @_rnn_seq_kernel(%arg0: memref<1x24xf32, #tpu.memory_space<vmem>>, %arg1: memref<1x32xf32, #tpu.memory_space<vmem>>, %arg2: memref<24x32xf32, #tpu.memory_space<vmem>>, %arg3: memref<32x96xf32, #tpu.memory_space<vmem>>, %arg4: memref<32x96xf32, #tpu.memory_space<vmem>>, %arg5: memref<32x16xf32, #tpu.memory_space<vmem>>, %arg6: memref<4x96xf32, #tpu.memory_space<vmem>>, %arg7: memref<1x16xf32, #tpu.memory_space<vmem>>, %arg8: memref<1x32xf32, #tpu.memory_space<vmem>>, %arg9: memref<1x32xf32, #tpu.memory_space<vmem>>) attributes {dimension_semantics = [], scalar_prefetch = 0 : i64, scratch_operands = 1 : i64, tpu.core_type = #tpu.core_type<tc>} {
    %c0 = arith.constant 0 : index
    %c0_0 = arith.constant 0 : index
    %0 = vector.load %arg6[%c0, %c0_0] : memref<4x96xf32, #tpu.memory_space<vmem>>, vector<4x96xf32>
    %1 = vector.extract_strided_slice %0 {offsets = [0, 0], sizes = [1, 32], strides = [1, 1]} : vector<4x96xf32> to vector<1x32xf32>
    %2 = vector.extract_strided_slice %0 {offsets = [1, 0], sizes = [1, 96], strides = [1, 1]} : vector<4x96xf32> to vector<1x96xf32>
    %3 = vector.extract_strided_slice %0 {offsets = [2, 0], sizes = [1, 32], strides = [1, 1]} : vector<4x96xf32> to vector<1x32xf32>
    %4 = vector.extract_strided_slice %0 {offsets = [3, 0], sizes = [1, 16], strides = [1, 1]} : vector<4x96xf32> to vector<1x16xf32>
    %c0_1 = arith.constant 0 : index
    %c0_2 = arith.constant 0 : index
    %5 = vector.load %arg0[%c0_1, %c0_2] : memref<1x24xf32, #tpu.memory_space<vmem>>, vector<1x24xf32>
    %c0_3 = arith.constant 0 : index
    %c0_4 = arith.constant 0 : index
    %6 = vector.load %arg2[%c0_3, %c0_4] : memref<24x32xf32, #tpu.memory_space<vmem>>, vector<24x32xf32>
    %cst = arith.constant dense<0.000000e+00> : vector<1x32xf32>
    %7 = tpu.matmul %5, %6, %cst {dimension_numbers = #tpu.dot_dimension_numbers<[1], [0], [0], [1], [0, 0, 1, 1], [], []>} : vector<1x24xf32>, vector<24x32xf32>, vector<1x32xf32> -> vector<1x32xf32>
    %8 = arith.addf %7, %1 : vector<1x32xf32>
    %cst_5 = arith.constant 0.000000e+00 : f32
    %9 = vector.broadcast %cst_5 : f32 to vector<1x32xf32>
    %10 = arith.maximumf %8, %9 : vector<1x32xf32>
    %c0_6 = arith.constant 0 : index
    %c0_7 = arith.constant 0 : index
    %11 = vector.load %arg3[%c0_6, %c0_7] : memref<32x96xf32, #tpu.memory_space<vmem>>, vector<32x96xf32>
    %cst_8 = arith.constant dense<0.000000e+00> : vector<1x96xf32>
    %12 = tpu.matmul %10, %11, %cst_8 {dimension_numbers = #tpu.dot_dimension_numbers<[1], [0], [0], [1], [0, 0, 1, 1], [], []>} : vector<1x32xf32>, vector<32x96xf32>, vector<1x96xf32> -> vector<1x96xf32>
    %13 = arith.addf %12, %2 : vector<1x96xf32>
    %c0_9 = arith.constant 0 : index
    %c0_10 = arith.constant 0 : index
    %14 = vector.load %arg4[%c0_9, %c0_10] : memref<32x96xf32, #tpu.memory_space<vmem>>, vector<32x96xf32>
    %c0_11 = arith.constant 0 : index
    %c0_12 = arith.constant 0 : index
    %15 = vector.load %arg1[%c0_11, %c0_12] : memref<1x32xf32, #tpu.memory_space<vmem>>, vector<1x32xf32>
    %cst_13 = arith.constant dense<0.000000e+00> : vector<1x96xf32>
    %16 = tpu.matmul %15, %14, %cst_13 {dimension_numbers = #tpu.dot_dimension_numbers<[1], [0], [0], [1], [0, 0, 1, 1], [], []>} : vector<1x32xf32>, vector<32x96xf32>, vector<1x96xf32> -> vector<1x96xf32>
    %17 = vector.extract_strided_slice %13 {offsets = [0, 0], sizes = [1, 64], strides = [1, 1]} : vector<1x96xf32> to vector<1x64xf32>
    %18 = vector.extract_strided_slice %16 {offsets = [0, 0], sizes = [1, 64], strides = [1, 1]} : vector<1x96xf32> to vector<1x64xf32>
    %19 = arith.addf %17, %18 : vector<1x64xf32>
    %20 = arith.negf %19 : vector<1x64xf32>
    %21 = math.exp %20 : vector<1x64xf32>
    %cst_14 = arith.constant 1.000000e+00 : f32
    %22 = vector.broadcast %cst_14 : f32 to vector<1x64xf32>
    %23 = arith.addf %22, %21 : vector<1x64xf32>
    %24 = arith.divf %22, %23 : vector<1x64xf32>
    %25 = vector.extract_strided_slice %24 {offsets = [0, 0], sizes = [1, 32], strides = [1, 1]} : vector<1x64xf32> to vector<1x32xf32>
    %26 = vector.extract_strided_slice %24 {offsets = [0, 32], sizes = [1, 32], strides = [1, 1]} : vector<1x64xf32> to vector<1x32xf32>
    %27 = vector.extract_strided_slice %13 {offsets = [0, 64], sizes = [1, 32], strides = [1, 1]} : vector<1x96xf32> to vector<1x32xf32>
    %28 = vector.extract_strided_slice %16 {offsets = [0, 64], sizes = [1, 32], strides = [1, 1]} : vector<1x96xf32> to vector<1x32xf32>
    %29 = arith.addf %28, %3 : vector<1x32xf32>
    %30 = arith.mulf %25, %29 : vector<1x32xf32>
    %31 = arith.addf %27, %30 : vector<1x32xf32>
    %32 = math.tanh %31 : vector<1x32xf32>
    %cst_15 = arith.constant 1.000000e+00 : f32
    %33 = vector.broadcast %cst_15 : f32 to vector<1x32xf32>
    %34 = arith.subf %33, %26 : vector<1x32xf32>
    %35 = arith.mulf %34, %32 : vector<1x32xf32>
    %36 = arith.mulf %26, %15 : vector<1x32xf32>
    %37 = arith.addf %35, %36 : vector<1x32xf32>
    %c0_16 = arith.constant 0 : index
    %c0_17 = arith.constant 0 : index
    %38 = vector.load %arg9[%c0_16, %c0_17] : memref<1x32xf32, #tpu.memory_space<vmem>>, vector<1x32xf32>
    tpu.vector_store %arg9[%c0_16, %c0_17], %37 {strides = array<i32>} : memref<1x32xf32, #tpu.memory_space<vmem>>, vector<1x32xf32>,
    %c0_18 = arith.constant 0 : index
    %c0_19 = arith.constant 0 : index
    %39 = vector.load %arg8[%c0_18, %c0_19] : memref<1x32xf32, #tpu.memory_space<vmem>>, vector<1x32xf32>
    tpu.vector_store %arg8[%c0_18, %c0_19], %37 {strides = array<i32>} : memref<1x32xf32, #tpu.memory_space<vmem>>, vector<1x32xf32>,
    %c0_20 = arith.constant 0 : index
    %c0_21 = arith.constant 0 : index
    %40 = vector.load %arg9[%c0_20, %c0_21] : memref<1x32xf32, #tpu.memory_space<vmem>>, vector<1x32xf32>
    %c0_22 = arith.constant 0 : index
    %c0_23 = arith.constant 0 : index
    %41 = vector.load %arg5[%c0_22, %c0_23] : memref<32x16xf32, #tpu.memory_space<vmem>>, vector<32x16xf32>
    %cst_24 = arith.constant dense<0.000000e+00> : vector<1x16xf32>
    %42 = tpu.matmul %40, %41, %cst_24 {dimension_numbers = #tpu.dot_dimension_numbers<[1], [0], [0], [1], [0, 0, 1, 1], [], []>} : vector<1x32xf32>, vector<32x16xf32>, vector<1x16xf32> -> vector<1x16xf32>
    %43 = arith.addf %42, %4 : vector<1x16xf32>
    %cst_25 = arith.constant dense<0xFF800000> : vector<1xf32>
    %44 = vector.multi_reduction <maximumf>, %43, %cst_25 [1] : vector<1x16xf32> to vector<1xf32>
    %45 = vector.shape_cast %44 : vector<1xf32> to vector<1x1xf32>
    %46 = vector.broadcast %45 : vector<1x1xf32> to vector<1x16xf32>
    %47 = arith.subf %43, %46 : vector<1x16xf32>
    %48 = math.exp %47 : vector<1x16xf32>
    %cst_26 = arith.constant dense<0.000000e+00> : vector<1xf32>
    %49 = vector.multi_reduction <add>, %48, %cst_26 [1] : vector<1x16xf32> to vector<1xf32>
    %50 = vector.shape_cast %49 : vector<1xf32> to vector<1x1xf32>
    %51 = math.log %50 : vector<1x1xf32>
    %52 = vector.broadcast %51 : vector<1x1xf32> to vector<1x16xf32>
    %53 = arith.subf %47, %52 : vector<1x16xf32>
    %c0_27 = arith.constant 0 : index
    %c0_28 = arith.constant 0 : index
    %54 = vector.load %arg7[%c0_27, %c0_28] : memref<1x16xf32, #tpu.memory_space<vmem>>, vector<1x16xf32>
    tpu.vector_store %arg7[%c0_27, %c0_28], %53 {strides = array<i32>} : memref<1x16xf32, #tpu.memory_space<vmem>>, vector<1x16xf32>,
    return
  }
}

</mosaic_0001>

<llo_original>
// kernel: forward_sequence.1
$region0: #{forward_sequence.1}
  #allocation0 [shape = 'u32[]', space=smem, size = 0x4, offset = 0x4, fixed_abs, tag = 'smem constant byte address 0x4 - core index']
  #allocation1 [shape = 'u32[144,128]{1,0:T(1,128)}', space=vmem, size = 0x12000, scoped, tag = 'internal scratch']
  #allocation2 [shape = 'f32[1,32]{1,0:T(1,128)}', space=vmem, size = 0x200, scoped, tag = 'scratch operand']
  %s0 = inlined_call_operand.vmem [shape: f32[1,24], index: 0, kind: input, shape index: {}]
  %s1 = inlined_call_operand.vmem [shape: f32[1,32], index: 1, kind: input, shape index: {}, may-alias: {1,8}]
  %s2 = inlined_call_operand.hbm [shape: f32[24,32], index: 2, kind: input, shape index: {}]
  %s3 = inlined_call_operand.hbm [shape: f32[32,96], index: 3, kind: input, shape index: {}]
  %s4 = inlined_call_operand.hbm [shape: f32[32,96], index: 4, kind: input, shape index: {}]
  %s5 = inlined_call_operand.hbm [shape: f32[32,16], index: 5, kind: input, shape index: {}]
  %s6 = inlined_call_operand.vmem [shape: f32[4,96], index: 6, kind: input, shape index: {}]
  %s7 = inlined_call_operand.hbm [shape: f32[1,16], index: 7, kind: output, shape index: {0}]
  %s8 = inlined_call_operand.vmem [shape: f32[1,32], index: 8, kind: output, shape index: {1}, may-alias: {1,8}]
  %9 = xla_tuple %s7, %s8
  %s10 = sld [smem:[#allocation0]]
  $region62: #{forward_sequence.1} parent=0
    _
  %s12 = ssub.s32 1, %s10
  %s13 = scalar_select 0, %s12, %s10
  $region1: #{forward_sequence.1} parent=0
    #allocation3 [shape = 'u8[12288]{0}', space=vmem, size = 0x3000, scoped, tag = 'input window, operand 2, single buffered']
    #allocation4 [shape = 's32[1]{0}', space=sflag, size = 0x4, scoped, tag = 'scoped memory for forward_sequence.1']
    #allocation5 [shape = 's32[1]{0}', space=sflag, size = 0x4, scoped, tag = 'scoped memory for forward_sequence.1']
    #allocation6 [shape = 'u8[16384]{0}', space=vmem, size = 0x4000, scoped, tag = 'input window, operand 3, single buffered']
    #allocation7 [shape = 's32[1]{0}', space=sflag, size = 0x4, scoped, tag = 'scoped memory for forward_sequence.1']
    #allocation8 [shape = 'u8[16384]{0}', space=vmem, size = 0x4000, scoped, tag = 'input window, operand 4, single buffered']
    #allocation9 [shape = 'u8[16384]{0}', space=vmem, size = 0x4000, scoped, tag = 'input window, operand 5, single buffered']
    #allocation10 [shape = 's32[1]{0}', space=sflag, size = 0x4, scoped, tag = 'scoped memory for forward_sequence.1']
    #allocation11 [shape = 'u8[512]{0}', space=vmem, size = 0x400, scoped, tag = 'output window, operand 0, single buffered']
    %14 = vsyncpa [#allocation4], 0
    %15 = vsyncpa [#allocation7], 0
    %16 = vsyncpa [#allocation10], 0
    %17 = vsyncpa [#allocation5], 0
    // Predicated region
    $region2: #{forward_sequence.1} parent=1 // pred_check
      _
    $region3: #{forward_sequence.1} parent=1 // pred_check_branch
      %19 = sbr.rel (0) target = $region5
    $region4: #{forward_sequence.1} parent=1 // pred_region
      _
    $region5: #{forward_sequence.1} parent=1 // pred_fallthru
      _
    // Predicated region
    $region6: #{forward_sequence.1} parent=1 // pred_check
      _
    $region7: #{forward_sequence.1} parent=1 // pred_check_branch
      %21 = sbr.rel (0) target = $region9
    $region8: #{forward_sequence.1} parent=1 // pred_region
      _
    $region9: #{forward_sequence.1} parent=1 // pred_fallthru
      _
    // Predicated region
    $region10: #{forward_sequence.1} parent=1 // pred_check
      _
    $region11: #{forward_sequence.1} parent=1 // pred_check_branch
      %23 = sbr.rel (0) target = $region13
    $region12: #{forward_sequence.1} parent=1 // pred_region
      %s25 = ssub.s32 384, 384
      %26 = vsyncadd [#allocation4], %s25
      %s27 = sshll.u32 [#allocation3], 4
      %s28 = int_to_ptr.vmem [resolvable:$true] %s27
      %33 = dma.hbm_to_vmem [thread:$0]  %s2, 384, %s28, [#allocation4], 128, 128, 8
    $region13: #{forward_sequence.1} parent=1 // pred_fallthru
      _
    // Predicated region
    $region14: #{forward_sequence.1} parent=1 // pred_check
      _
    $region15: #{forward_sequence.1} parent=1 // pred_check_branch
      %35 = sbr.rel (0) target = $region17
    $region16: #{forward_sequence.1} parent=1 // pred_region
      %s37 = ssub.s32 512, 512
      %38 = vsyncadd [#allocation7], %s37
      %s39 = sshll.u32 [#allocation6], 4
      %s40 = int_to_ptr.vmem [resolvable:$true] %s39
      %45 = dma.hbm_to_vmem [thread:$0]  %s3, 512, %s40, [#allocation7], 128, 128, 8
    $region17: #{forward_sequence.1} parent=1 // pred_fallthru
      _
    // Predicated region
    $region18: #{forward_sequence.1} parent=1 // pred_check
      _
    $region19: #{forward_sequence.1} parent=1 // pred_check_branch
      %47 = sbr.rel (0) target = $region21
    $region20: #{forward_sequence.1} parent=1 // pred_region
      %s49 = ssub.s32 512, 512
      %50 = vsyncadd [#allocation7], %s49
      %s51 = sshll.u32 [#allocation8], 4
      %s52 = int_to_ptr.vmem [resolvable:$true] %s51
      %57 = dma.hbm_to_vmem [thread:$0]  %s4, 512, %s52, [#allocation7], 128, 128, 8
    $region21: #{forward_sequence.1} parent=1 // pred_fallthru
      _
    // Predicated region
    $region22: #{forward_sequence.1} parent=1 // pred_check
      _
    $region23: #{forward_sequence.1} parent=1 // pred_check_branch
      %59 = sbr.rel (0) target = $region25
    $region24: #{forward_sequence.1} parent=1 // pred_region
      %s61 = ssub.s32 512, 512
      %62 = vsyncadd [#allocation10], %s61
      %s63 = sshll.u32 [#allocation9], 4
      %s64 = int_to_ptr.vmem [resolvable:$true] %s63
      %69 = dma.hbm_to_vmem [thread:$0]  %s5, 512, %s64, [#allocation10], 128, 128, 8
    $region25: #{forward_sequence.1} parent=1 // pred_fallthru
      _
    // Predicated region
    $region26: #{forward_sequence.1} parent=1 // pred_check
      _
    $region27: #{forward_sequence.1} parent=1 // pred_check_branch
      %71 = sbr.rel (0) target = $region29
    $region28: #{forward_sequence.1} parent=1 // pred_region
      _
    $region29: #{forward_sequence.1} parent=1 // pred_fallthru
      _
    // Predicated region
    $region30: #{forward_sequence.1} parent=1 // pred_check
      _
    $region31: #{forward_sequence.1} parent=1 // pred_check_branch
      %73 = sbr.rel (0) target = $region33
    $region32: #{forward_sequence.1} parent=1 // pred_region
      %74 = dma.done [#allocation4], 384
    $region33: #{forward_sequence.1} parent=1 // pred_fallthru
      _
    // Predicated region
    $region34: #{forward_sequence.1} parent=1 // pred_check
      _
    $region35: #{forward_sequence.1} parent=1 // pred_check_branch
      %76 = sbr.rel (0) target = $region37
    $region36: #{forward_sequence.1} parent=1 // pred_region
      %77 = dma.done [#allocation7], 512
    $region37: #{forward_sequence.1} parent=1 // pred_fallthru
      _
    // Predicated region
    $region38: #{forward_sequence.1} parent=1 // pred_check
      _
    $region39: #{forward_sequence.1} parent=1 // pred_check_branch
      %79 = sbr.rel (0) target = $region41
    $region40: #{forward_sequence.1} parent=1 // pred_region
      %80 = dma.done [#allocation7], 512
    $region41: #{forward_sequence.1} parent=1 // pred_fallthru
      _
    // Predicated region
    $region42: #{forward_sequence.1} parent=1 // pred_check
      _
    $region43: #{forward_sequence.1} parent=1 // pred_check_branch
      %82 = sbr.rel (0) target = $region45
    $region44: #{forward_sequence.1} parent=1 // pred_region
      %83 = dma.done [#allocation10], 512
    $region45: #{forward_sequence.1} parent=1 // pred_fallthru
      _
    %v84 = vld [vmem:[%s6] sm:$0xf]
    %v85 = vld [vmem:[%s0] sm:$0x1]
    %v86 = vld [vmem:[#allocation3] sm:$0xff]
    %v87 = vld [vmem:[#allocation3 + $0x8] sm:$0xff]
    %v88 = vld [vmem:[#allocation3 + $0x10] sm:$0xff]
    %vm89 = vcmask 195584
    %v91 = vsel %vm89, %v85, 0
    %93 = vmatprep.subr.mxu0 0.0
    %94 = vmatpush1.msra.mxu0 %v86
    %95 = vmatprep.subr.mxu0 0.0
    %96 = vmatpush1.msra.mxu0 %v87
    %97 = vmatprep.subr.mxu0 0.0
    %98 = vmatpush1.msra.mxu0 %v88
    %99 = vmatprep.subr.mxu0 0.0
    %100 = vmatpush1.msra.mxu0 0.0
    %101 = vmatprep.subr.mxu0 0.0
    %102 = vmatpush1.msra.mxu0 0.0
    %103 = vmatprep.subr.mxu0 0.0
    %104 = vmatpush1.msra.mxu0 0.0
    %105 = vmatprep.subr.mxu0 0.0
    %106 = vmatpush1.msra.mxu0 0.0
    %107 = vmatprep.subr.mxu0 0.0
    %108 = vmatpush1.msra.mxu0 0.0
    %109 = vmatprep.subr.mxu0 0.0
    %110 = vmatpush1.msra.mxu0 0.0
    %111 = vmatprep.subr.mxu0 0.0
    %112 = vmatpush1.msra.mxu0 0.0
    %113 = vmatprep.subr.mxu0 0.0
    %114 = vmatpush1.msra.mxu0 0.0
    %115 = vmatprep.subr.mxu0 0.0
    %116 = vmatpush1.msra.mxu0 0.0
    %117 = vmatprep.subr.mxu0 0.0
    %118 = vmatpush1.msra.mxu0 0.0
    %119 = vmatprep.subr.mxu0 0.0
    %120 = vmatpush1.msra.mxu0 0.0
    %121 = vmatprep.subr.mxu0 0.0
    %122 = vmatpush1.msra.mxu0 0.0
    %123 = vmatprep.subr.mxu0 0.0
    %124 = vmatpush1.msra.mxu0 0.0
    %125 = vmatprep.subr.mxu0 0.0
    %126 = vmatpush1.msra.mxu0 0.0
    %127 = vmatprep.subr.mxu0 0.0
    %128 = vmatpush1.msra.mxu0 0.0
    %129 = vmatprep.subr.mxu0 0.0
    %130 = vmatpush1.msra.mxu0 0.0
    %131 = vmatprep.subr.mxu0 0.0
    %132 = vmatpush1.msra.mxu0 0.0
    %133 = vmatprep.subr.mxu0 0.0
    %134 = vmatpush1.msra.mxu0 0.0
    %135 = vmatprep.subr.mxu0 0.0
    %136 = vmatpush1.msra.mxu0 0.0
    %137 = vmatprep.subr.mxu0 0.0
    %138 = vmatpush1.msra.mxu0 0.0
    %139 = vmatprep.subr.mxu0 0.0
    %140 = vmatpush1.msra.mxu0 0.0
    %141 = vmatprep.subr.mxu0 0.0
    %142 = vmatpush1.msra.mxu0 0.0
    %143 = vmatprep.subr.mxu0 0.0
    %144 = vmatpush1.msra.mxu0 0.0
    %145 = vmatprep.subr.mxu0 0.0
    %146 = vmatpush1.msra.mxu0 0.0
    %147 = vmatprep.subr.mxu0 0.0
    %148 = vmatpush1.msra.mxu0 0.0
    %149 = vmatprep.subr.mxu0 0.0
    %150 = vmatpush1.msra.mxu0 0.0
    %151 = vmatprep.subr.mxu0 0.0
    %152 = vmatpush1.msra.mxu0 0.0
    %153 = vmatprep.subr.mxu0 0.0
    %154 = vmatpush1.msra.mxu0 0.0
    %155 = vmatprep.subr.mxu0 0.0
    %156 = vmatpush1.msra.mxu0 0.0
    %157 = vmatprep.mubr.f32.mxu0 0.0
    %158 = vmatmul.mubr.f32.gmra.mrb[0].mxu0 %v91
    %v159 = vpop.f32.mrb[0].mxu0
    %v160 = vadd.f32 %v84, %v159
    %v161 = vpop.f32.mrb[0].mxu0
    %162 = vdwg.mxu0
    %v163 = vmax.f32 %v160, 0.0
    %v164 = vld [vmem:[#allocation6] sm:$0xff]
    %v165 = vld [vmem:[#allocation6 + $0x8] sm:$0xff]
    %v166 = vld [vmem:[#allocation6 + $0x10] sm:$0xff]
    %v167 = vld [vmem:[#allocation6 + $0x18] sm:$0xff]
    %v169 = vrot.slane %v84, 1
    %vm171 = vcmask 261120
    %v173 = vsel %vm171, %v163, 0
    %175 = vmatprep.subr.mxu0 0.0
    %176 = vmatpush1.msra.mxu0 %v164
    %177 = vmatprep.subr.mxu0 0.0
    %178 = vmatpush1.msra.mxu0 %v165
    %179 = vmatprep.subr.mxu0 0.0
    %180 = vmatpush1.msra.mxu0 %v166
    %181 = vmatprep.subr.mxu0 0.0
    %182 = vmatpush1.msra.mxu0 %v167
    %183 = vmatprep.subr.mxu0 0.0
    %184 = vmatpush1.msra.mxu0 0.0
    %185 = vmatprep.subr.mxu0 0.0
    %186 = vmatpush1.msra.mxu0 0.0
    %187 = vmatprep.subr.mxu0 0.0
    %188 = vmatpush1.msra.mxu0 0.0
    %189 = vmatprep.subr.mxu0 0.0
    %190 = vmatpush1.msra.mxu0 0.0
    %191 = vmatprep.subr.mxu0 0.0
    %192 = vmatpush1.msra.mxu0 0.0
    %193 = vmatprep.subr.mxu0 0.0
    %194 = vmatpush1.msra.mxu0 0.0
    %195 = vmatprep.subr.mxu0 0.0
    %196 = vmatpush1.msra.mxu0 0.0
    %197 = vmatprep.subr.mxu0 0.0
    %198 = vmatpush1.msra.mxu0 0.0
    %199 = vmatprep.subr.mxu0 0.0
    %200 = vmatpush1.msra.mxu0 0.0
    %201 = vmatprep.subr.mxu0 0.0
    %202 = vmatpush1.msra.mxu0 0.0
    %203 = vmatprep.subr.mxu0 0.0
    %204 = vmatpush1.msra.mxu0 0.0
    %205 = vmatprep.subr.mxu0 0.0
    %206 = vmatpush1.msra.mxu0 0.0
    %207 = vmatprep.subr.mxu0 0.0
    %208 = vmatpush1.msra.mxu0 0.0
    %209 = vmatprep.subr.mxu0 0.0
    %210 = vmatpush1.msra.mxu0 0.0
    %211 = vmatprep.subr.mxu0 0.0
    %212 = vmatpush1.msra.mxu0 0.0
    %213 = vmatprep.subr.mxu0 0.0
    %214 = vmatpush1.msra.mxu0 0.0
    %215 = vmatprep.subr.mxu0 0.0
    %216 = vmatpush1.msra.mxu0 0.0
    %217 = vmatprep.subr.mxu0 0.0
    %218 = vmatpush1.msra.mxu0 0.0
    %219 = vmatprep.subr.mxu0 0.0
    %220 = vmatpush1.msra.mxu0 0.0
    %221 = vmatprep.subr.mxu0 0.0
    %222 = vmatpush1.msra.mxu0 0.0
    %223 = vmatprep.subr.mxu0 0.0
    %224 = vmatpush1.msra.mxu0 0.0
    %225 = vmatprep.subr.mxu0 0.0
    %226 = vmatpush1.msra.mxu0 0.0
    %227 = vmatprep.subr.mxu0 0.0
    %228 = vmatpush1.msra.mxu0 0.0
    %229 = vmatprep.subr.mxu0 0.0
    %230 = vmatpush1.msra.mxu0 0.0
    %231 = vmatprep.subr.mxu0 0.0
    %232 = vmatpush1.msra.mxu0 0.0
    %233 = vmatprep.subr.mxu0 0.0
    %234 = vmatpush1.msra.mxu0 0.0
    %235 = vmatprep.subr.mxu0 0.0
    %236 = vmatpush1.msra.mxu0 0.0
    %237 = vmatprep.subr.mxu0 0.0
    %238 = vmatpush1.msra.mxu0 0.0
    %239 = vmatprep.mubr.f32.mxu0 0.0
    %240 = vmatmul.mubr.f32.gmra.mrb[0].mxu0 %v173
    %v241 = vpop.f32.mrb[0].mxu0
    %v242 = vadd.f32 %v169, %v241
    %v243 = vpop.f32.mrb[0].mxu0
    %244 = vdwg.mxu0
    %v245 = vld [vmem:[#allocation8] sm:$0xff]
    %v246 = vld [vmem:[#allocation8 + $0x8] sm:$0xff]
    %v247 = vld [vmem:[#allocation8 + $0x10] sm:$0xff]
    %v248 = vld [vmem:[#allocation8 + $0x18] sm:$0xff]
    %v249 = vld [vmem:[%s1] sm:$0x1]
    %v251 = vsel %vm171, %v249, 0
    %253 = vmatprep.subr.mxu0 0.0
    %254 = vmatpush1.msra.mxu0 %v245
    %255 = vmatprep.subr.mxu0 0.0
    %256 = vmatpush1.msra.mxu0 %v246
    %257 = vmatprep.subr.mxu0 0.0
    %258 = vmatpush1.msra.mxu0 %v247
    %259 = vmatprep.subr.mxu0 0.0
    %260 = vmatpush1.msra.mxu0 %v248
    %261 = vmatprep.subr.mxu0 0.0
    %262 = vmatpush1.msra.mxu0 0.0
    %263 = vmatprep.subr.mxu0 0.0
    %264 = vmatpush1.msra.mxu0 0.0
    %265 = vmatprep.subr.mxu0 0.0
    %266 = vmatpush1.msra.mxu0 0.0
    %267 = vmatprep.subr.mxu0 0.0
    %268 = vmatpush1.msra.mxu0 0.0
    %269 = vmatprep.subr.mxu0 0.0
    %270 = vmatpush1.msra.mxu0 0.0
    %271 = vmatprep.subr.mxu0 0.0
    %272 = vmatpush1.msra.mxu0 0.0
    %273 = vmatprep.subr.mxu0 0.0
    %274 = vmatpush1.msra.mxu0 0.0
    %275 = vmatprep.subr.mxu0 0.0
    %276 = vmatpush1.msra.mxu0 0.0
    %277 = vmatprep.subr.mxu0 0.0
    %278 = vmatpush1.msra.mxu0 0.0
    %279 = vmatprep.subr.mxu0 0.0
    %280 = vmatpush1.msra.mxu0 0.0
    %281 = vmatprep.subr.mxu0 0.0
    %282 = vmatpush1.msra.mxu0 0.0
    %283 = vmatprep.subr.mxu0 0.0
    %284 = vmatpush1.msra.mxu0 0.0
    %285 = vmatprep.subr.mxu0 0.0
    %286 = vmatpush1.msra.mxu0 0.0
    %287 = vmatprep.subr.mxu0 0.0
    %288 = vmatpush1.msra.mxu0 0.0
    %289 = vmatprep.subr.mxu0 0.0
    %290 = vmatpush1.msra.mxu0 0.0
    %291 = vmatprep.subr.mxu0 0.0
    %292 = vmatpush1.msra.mxu0 0.0
    %293 = vmatprep.subr.mxu0 0.0
    %294 = vmatpush1.msra.mxu0 0.0
    %295 = vmatprep.subr.mxu0 0.0
    %296 = vmatpush1.msra.mxu0 0.0
    %297 = vmatprep.subr.mxu0 0.0
    %298 = vmatpush1.msra.mxu0 0.0
    %299 = vmatprep.subr.mxu0 0.0
    %300 = vmatpush1.msra.mxu0 0.0
    %301 = vmatprep.subr.mxu0 0.0
    %302 = vmatpush1.msra.mxu0 0.0
    %303 = vmatprep.subr.mxu0 0.0
    %304 = vmatpush1.msra.mxu0 0.0
    %305 = vmatprep.subr.mxu0 0.0
    %306 = vmatpush1.msra.mxu0 0.0
    %307 = vmatprep.subr.mxu0 0.0
    %308 = vmatpush1.msra.mxu0 0.0
    %309 = vmatprep.subr.mxu0 0.0
    %310 = vmatpush1.msra.mxu0 0.0
    %311 = vmatprep.subr.mxu0 0.0
    %312 = vmatpush1.msra.mxu0 0.0
    %313 = vmatprep.subr.mxu0 0.0
    %314 = vmatpush1.msra.mxu0 0.0
    %315 = vmatprep.subr.mxu0 0.0
    %316 = vmatpush1.msra.mxu0 0.0
    %317 = vmatprep.mubr.f32.mxu0 0.0
    %318 = vmatmul.mubr.f32.gmra.mrb[0].mxu0 %v251
    %v319 = vpop.f32.mrb[0].mxu0
    %v320 = vadd.f32 0.0, %v319
    %v321 = vpop.f32.mrb[0].mxu0
    %322 = vdwg.mxu0
    %v323 = vadd.f32 %v242, %v320
    %v324 = vxor.u32 %v323, 2147483648
    %v325 = vmul.f32 %v324, 1.442695
    %v326 = vpow.pop %v325
    %v327 = vadd.f32 %v326, 1.0
    %v328 = vrcp.pop %v327
    %v329 = vmul.f32 1.0, %v328
    %v330 = vrot.slane %v84, 2
    %331 = vrot.lane.b32.xlu0 %v330, 64
    %v332 = vpop.permute.xlu0 %331
    %v334 = vadd.f32 %v320, %v332
    %336 = vrot.lane.b32.xlu0 %v334, 64
    %v337 = vpop.permute.xlu0 %336
    %v339 = vmul.f32 %v329, %v337
    %341 = vrot.lane.b32.xlu0 %v339, 64
    %v342 = vpop.permute.xlu0 %341
    %v344 = vadd.f32 %v242, %v342
    %v345 = vtanh.pop %v344
    %v346 = vsub.f32 1.0, %v329
    %348 = vrot.lane.b32.xlu0 %v345, 96
    %v349 = vpop.permute.xlu0 %348
    %v351 = vmul.f32 %v346, %v349
    %v352 = vlaneseq
    %v353 = vshrl.u32 %v352, 7
    %v354 = vsub.s32 0, %v353
    %v355 = vrot.slane %v249, %v354
    %356 = vrot.lane.b32.xlu0 %v355, 32
    %v357 = vpop.permute.xlu0 %356
    %v359 = vmul.f32 %v329, %v357
    %v360 = vadd.f32 %v351, %v359
    %362 = vrot.lane.b32.xlu0 %v360, 96
    %v363 = vpop.permute.xlu0 %362
    %vm365 = vcmask 253952
    %366 = vst.msk [vmem:[#allocation2] sm:$0x1] %vm365, %v363
    %367 = vst.msk [vmem:[%s8] sm:$0x1] %vm365, %v363
    %v368 = vld [vmem:[#allocation2] sm:$0x1]
    %v369 = vld [vmem:[#allocation9] sm:$0xff]
    %v370 = vld [vmem:[#allocation9 + $0x8] sm:$0xff]
    %v371 = vld [vmem:[#allocation9 + $0x10] sm:$0xff]
    %v372 = vld [vmem:[#allocation9 + $0x18] sm:$0xff]
    %v373 = vrot.slane %v84, 3
    %v376 = vsel %vm171, %v368, 0
    %378 = vmatprep.subr.mxu0 0.0
    %379 = vmatpush1.msra.mxu0 %v369
    %380 = vmatprep.subr.mxu0 0.0
    %381 = vmatpush1.msra.mxu0 %v370
    %382 = vmatprep.subr.mxu0 0.0
    %383 = vmatpush1.msra.mxu0 %v371
    %384 = vmatprep.subr.mxu0 0.0
    %385 = vmatpush1.msra.mxu0 %v372
    %386 = vmatprep.subr.mxu0 0.0
    %387 = vmatpush1.msra.mxu0 0.0
    %388 = vmatprep.subr.mxu0 0.0
    %389 = vmatpush1.msra.mxu0 0.0
    %390 = vmatprep.subr.mxu0 0.0
    %391 = vmatpush1.msra.mxu0 0.0
    %392 = vmatprep.subr.mxu0 0.0
    %393 = vmatpush1.msra.mxu0 0.0
    %394 = vmatprep.subr.mxu0 0.0
    %395 = vmatpush1.msra.mxu0 0.0
    %396 = vmatprep.subr.mxu0 0.0
    %397 = vmatpush1.msra.mxu0 0.0
    %398 = vmatprep.subr.mxu0 0.0
    %399 = vmatpush1.msra.mxu0 0.0
    %400 = vmatprep.subr.mxu0 0.0
    %401 = vmatpush1.msra.mxu0 0.0
    %402 = vmatprep.subr.mxu0 0.0
    %403 = vmatpush1.msra.mxu0 0.0
    %404 = vmatprep.subr.mxu0 0.0
    %405 = vmatpush1.msra.mxu0 0.0
    %406 = vmatprep.subr.mxu0 0.0
    %407 = vmatpush1.msra.mxu0 0.0
    %408 = vmatprep.subr.mxu0 0.0
    %409 = vmatpush1.msra.mxu0 0.0
    %410 = vmatprep.subr.mxu0 0.0
    %411 = vmatpush1.msra.mxu0 0.0
    %412 = vmatprep.subr.mxu0 0.0
    %413 = vmatpush1.msra.mxu0 0.0
    %414 = vmatprep.subr.mxu0 0.0
    %415 = vmatpush1.msra.mxu0 0.0
    %416 = vmatprep.subr.mxu0 0.0
    %417 = vmatpush1.msra.mxu0 0.0
    %418 = vmatprep.subr.mxu0 0.0
    %419 = vmatpush1.msra.mxu0 0.0
    %420 = vmatprep.subr.mxu0 0.0
    %421 = vmatpush1.msra.mxu0 0.0
    %422 = vmatprep.subr.mxu0 0.0
    %423 = vmatpush1.msra.mxu0 0.0
    %424 = vmatprep.subr.mxu0 0.0
    %425 = vmatpush1.msra.mxu0 0.0
    %426 = vmatprep.subr.mxu0 0.0
    %427 = vmatpush1.msra.mxu0 0.0
    %428 = vmatprep.subr.mxu0 0.0
    %429 = vmatpush1.msra.mxu0 0.0
    %430 = vmatprep.subr.mxu0 0.0
    %431 = vmatpush1.msra.mxu0 0.0
    %432 = vmatprep.subr.mxu0 0.0
    %433 = vmatpush1.msra.mxu0 0.0
    %434 = vmatprep.subr.mxu0 0.0
    %435 = vmatpush1.msra.mxu0 0.0
    %436 = vmatprep.subr.mxu0 0.0
    %437 = vmatpush1.msra.mxu0 0.0
    %438 = vmatprep.subr.mxu0 0.0
    %439 = vmatpush1.msra.mxu0 0.0
    %440 = vmatprep.subr.mxu0 0.0
    %441 = vmatpush1.msra.mxu0 0.0
    %442 = vmatprep.mubr.f32.mxu0 0.0
    %443 = vmatmul.mubr.f32.gmra.mrb[0].mxu0 %v376
    %v444 = vpop.f32.mrb[0].mxu0
    %v445 = vadd.f32 %v373, %v444
    %v446 = vpop.f32.mrb[0].mxu0
    %447 = vdwg.mxu0
    %vm448 = vcmask 122880
    %v449 = vsel %vm448, %v445, -inf
    %450 = vmax.xlane.f32.xlu0 %v449
    %v451 = vpop.xlane.xlu0 %450
    %v452 = vsub.f32 %v445, %v451
    %v453 = vmul.f32 %v452, 1.442695
    %v454 = vpow.pop %v453
    %v455 = vsel %vm448, %v454, 0.0
    %456 = vadd.xlane.f32.xlu0 %v455
    %v457 = vpop.xlane.xlu0 %456
    %v458 = vlog2.pop %v457
    %v459 = vmul.f32 %v458, 0.6931472
    %v460 = vsub.f32 %v452, %v459
    %461 = vst.msk [vmem:[#allocation11] sm:$0x1] %vm448, %v460
    // Predicated region
    $region46: #{forward_sequence.1} parent=1 // pred_check
      _
    $region47: #{forward_sequence.1} parent=1 // pred_check_branch
      %463 = sbr.rel (0) target = $region49
    $region48: #{forward_sequence.1} parent=1 // pred_region
      %s465 = ssub.s32 16, 16
      %466 = vsyncadd [#allocation5], %s465
      %s468 = sshll.u32 [#allocation11], 4
      %s469 = int_to_ptr.vmem [resolvable:$true] %s468
      %471 = dma.vmem_to_hbm [thread:$0]  %s469, 16, %s7, [#allocation5]
    $region49: #{forward_sequence.1} parent=1 // pred_fallthru
      _
    // Predicated region
    $region50: #{forward_sequence.1} parent=1 // pred_check
      _
    $region51: #{forward_sequence.1} parent=1 // pred_check_branch
      %473 = sbr.rel (0) target = $region53
    $region52: #{forward_sequence.1} parent=1 // pred_region
      _
    $region53: #{forward_sequence.1} parent=1 // pred_fallthru
      _
    // Predicated region
    $region54: #{forward_sequence.1} parent=1 // pred_check
      _
    $region55: #{forward_sequence.1} parent=1 // pred_check_branch
      %475 = sbr.rel (0) target = $region57
    $region56: #{forward_sequence.1} parent=1 // pred_region
      %476 = dma.done [#allocation5], 16
    $region57: #{forward_sequence.1} parent=1 // pred_fallthru
      _
    // Predicated region
    $region58: #{forward_sequence.1} parent=1 // pred_check
      _
    $region59: #{forward_sequence.1} parent=1 // pred_check_branch
      %478 = sbr.rel (0) target = $region61
    $region60: #{forward_sequence.1} parent=1 // pred_region
      _
    $region61: #{forward_sequence.1} parent=1 // pred_fallthru
      _
    %479 = vsyncpa [#allocation4], 1
    %480 = vsyncpa [#allocation7], 1
    %481 = vsyncpa [#allocation10], 1
    %482 = vsyncpa [#allocation5], 1

</llo_original>
